<compile_context>
chip_gen: v7x
topology: tpu7x:2x2x1
jax: 0.10.0
libtpu: 0.0.40
codegen_flags: <defaults>
</compile_context>

<pallas_src>
import jax
import jax.numpy as jnp
from jax.experimental import pallas as pl
from jax.experimental.pallas import tpu as pltpu


def _scale_filter_kernel(scale_ref, x_ref, o_ref):
    # scale_ref: VMEM (TILE_R, 1); x_ref/o_ref: VMEM (TILE_R, TILE_L).
    # Lane-broadcast multiply on the VPU; cast back to the output dtype.
    o_ref[...] = (x_ref[...] * scale_ref[...]).astype(o_ref.dtype)


def _round_up(v, m):
    return ((v + m - 1) // m) * m


def _pick_tiles(rows, lanes, itemsize):
    """Generation-aware tile sizing for a mem-bound elementwise kernel."""
    # Packed-sublane granularity: 8 rows for 4-byte, 16 for 2-byte, 32 for 1-byte.
    sub = max(8, 32 // max(1, itemsize))

    try:
        info = pltpu.get_tpu_info()
        vmem_bytes = int(getattr(info, "vmem_capacity_bytes", 64 << 20))
    except Exception:
        vmem_bytes = 64 << 20  # conservative (v7x-sized) fallback

    # Per (double-buffered) buffer budget: 1/8 of physical VMEM, capped at 16 MiB.
    #   128 MiB parts (v5e/v6e) -> 16 MiB/buffer; 64 MiB v7x -> 8 MiB/buffer.
    per_buffer = min(16 << 20, max(1 << 20, vmem_bytes // 8))

    # Lane (last) dim: full extent when it fits; otherwise a multiple of 128
    # sized so at least `sub` rows fit the budget (ragged last block is masked).
    max_lane = max(128, ((per_buffer // (sub * itemsize)) // 128) * 128)
    tile_l = lanes if lanes <= max_lane else max_lane

    # Sublane (second-to-last) dim: full extent when it fits; otherwise the
    # largest multiple of `sub` within the budget (ragged last block is masked).
    budget_rows = max(sub, (per_buffer // max(1, tile_l * itemsize)) // sub * sub)
    tile_r = rows if rows <= budget_rows else budget_rows

    # Megacore (v7x): make sure a non-trivial tensor yields >= 2 grid blocks so
    # both TensorCores get work.  Negligible cost on single-TC v5e/v6e.
    total_bytes = rows * lanes * itemsize
    if total_bytes >= (4 << 20) and pl.cdiv(rows, tile_r) * pl.cdiv(lanes, tile_l) < 2:
        if rows > sub:
            tile_r = max(sub, _round_up(pl.cdiv(rows, 2), sub))
        elif lanes > 128:
            tile_l = max(128, _round_up(pl.cdiv(lanes, 2), 128))

    # VMEM budget: double-buffered x + out tiles, double-buffered lane-padded
    # (tile_r, 1) scale column (padded to 128 lanes, <= 4 B/elem), + headroom.
    tile_bytes = tile_r * tile_l * itemsize
    scale_tile_bytes = tile_r * 128 * 4
    vmem_limit = 4 * tile_bytes + 2 * scale_tile_bytes + (4 << 20)
    vmem_limit = max(16 << 20, min(vmem_limit, vmem_bytes * 7 // 8))
    return tile_r, tile_l, vmem_limit


def scale_filter(x, q, key, training=True, donate_x=False):
    """Pallas implementation of ScaleFilter.forward.

    x: [N, C, H, W] (NCHW). Returns x unchanged when not training.
    donate_x=True aliases the output onto x's HBM buffer (input index 1).
    """
    if not training:
        return x

    N, C, H, W = x.shape
    # Per-channel scale factors: 1 + q - 2*q*U[0,1)  (RNG / glue in plain JAX).
    rand = jax.random.uniform(key, (C,), dtype=jnp.float32)
    scale = (1.0 + q - 2.0 * q * rand).astype(jnp.float32)

    R, L = N * C, H * W
    x2 = x.reshape(R, L)                           # free reshape (row-major NCHW)
    scale_rows = jnp.tile(scale, N).reshape(R, 1)  # row r = n*C + c -> scale[c]

    # Keep the multiply in the narrow dtype for 16-bit floats (native bf16 VPU
    # on v6e/v7x; v5e promotes internally either way).  Other dtypes use f32.
    x_dt = jnp.dtype(x.dtype)
    if x_dt in (jnp.dtype(jnp.bfloat16), jnp.dtype(jnp.float16)):
        scale_rows = scale_rows.astype(x.dtype)

    tile_r, tile_l, vmem_limit = _pick_tiles(R, L, x_dt.itemsize)
    grid = (pl.cdiv(R, tile_r), pl.cdiv(L, tile_l))

    out2 = pl.pallas_call(
        _scale_filter_kernel,
        out_shape=jax.ShapeDtypeStruct((R, L), x.dtype),
        grid_spec=pltpu.PrefetchScalarGridSpec(
            num_scalar_prefetch=0,
            grid=grid,
            in_specs=[
                pl.BlockSpec((tile_r, 1), lambda i, j: (i, 0)),       # scale col
                pl.BlockSpec((tile_r, tile_l), lambda i, j: (i, j)),  # x tile
            ],
            out_specs=pl.BlockSpec((tile_r, tile_l), lambda i, j: (i, j)),
        ),
        compiler_params=pltpu.CompilerParams(
            # No reduction axis -> both parallel (lets v7x shard across 2 TCs).
            dimension_semantics=("parallel", "parallel"),
            vmem_limit_bytes=vmem_limit,
        ),
        # x2 is input index 1; reuse its HBM buffer for the output on request.
        input_output_aliases=({1: 0} if donate_x else {}),
    )(scale_rows, x2)

    return out2.reshape(N, C, H, W)


if __name__ == "__main__":
    key = jax.random.PRNGKey(0)
    kx, ks, kb = jax.random.split(key, 3)

    # --- f32 training-mode forward ---------------------------------------
    N, C, H, W = 2, 4, 16, 16
    q = 0.3
    x = jax.random.normal(kx, (N, C, H, W), dtype=jnp.float32)

    out = jax.block_until_ready(scale_filter(x, q, ks, training=True))

    # Reference in plain JAX (same RNG -> same scale factors).
    rand = jax.random.uniform(ks, (C,), dtype=jnp.float32)
    scale_ref = (1.0 + q - 2.0 * q * rand).reshape(1, C, 1, 1)
    ref = x * scale_ref
    assert jnp.allclose(out, ref, atol=1e-6, rtol=1e-6)

    # --- eval-mode forward: identity --------------------------------------
    out_eval = jax.block_until_ready(scale_filter(x, q, ks, training=False))
    assert jnp.array_equal(out_eval, x)

    # --- bf16 path (narrow-dtype scale, 16-row sublane packing) -----------
    Nb, Cb, Hb, Wb = 4, 4, 8, 16
    xb = jax.random.normal(kb, (Nb, Cb, Hb, Wb), dtype=jnp.bfloat16)
    outb = jax.block_until_ready(scale_filter(xb, q, ks, training=True))
    refb = xb.astype(jnp.float32) * scale_ref  # same C -> same scale factors
    assert jnp.allclose(outb.astype(jnp.float32), refb, atol=5e-2, rtol=5e-2)

    print("KERNEL_OK")
</pallas_src>

<mosaic_0001>
module attributes {stable_mosaic.version = 11 : i64} {
  func.func @_scale_filter_kernel(%arg0: i32, %arg1: i32, %arg2: memref<8x1xf32, #tpu.memory_space<vmem>>, %arg3: memref<8x256xf32, #tpu.memory_space<vmem>>, %arg4: memref<8x256xf32, #tpu.memory_space<vmem>>) attributes {dimension_semantics = [#tpu.dimension_semantics<parallel>, #tpu.dimension_semantics<parallel>], iteration_bounds = array<i64: 1, 1>, scalar_prefetch = 0 : i64, scratch_operands = 0 : i64, tpu.core_type = #tpu.core_type<tc>, window_params = [{transform_indices = @transform_0, window_bounds = array<i64: 8, 1>}, {transform_indices = @transform_1, window_bounds = array<i64: 8, 256>}, {transform_indices = @transform_2, window_bounds = array<i64: 8, 256>}]} {
    %c0 = arith.constant 0 : index
    %c0_0 = arith.constant 0 : index
    %0 = vector.load %arg3[%c0, %c0_0] : memref<8x256xf32, #tpu.memory_space<vmem>>, vector<8x256xf32>
    %c0_1 = arith.constant 0 : index
    %c0_2 = arith.constant 0 : index
    %1 = vector.load %arg2[%c0_1, %c0_2] : memref<8x1xf32, #tpu.memory_space<vmem>>, vector<8x1xf32>
    %2 = vector.broadcast %1 : vector<8x1xf32> to vector<8x256xf32>
    %3 = arith.mulf %0, %2 : vector<8x256xf32>
    %c0_3 = arith.constant 0 : index
    %c0_4 = arith.constant 0 : index
    %4 = vector.load %arg4[%c0_3, %c0_4] : memref<8x256xf32, #tpu.memory_space<vmem>>, vector<8x256xf32>
    tpu.vector_store %arg4[%c0_3, %c0_4], %3 {strides = array<i32>} : memref<8x256xf32, #tpu.memory_space<vmem>>, vector<8x256xf32>,
    return
  }
  func.func @transform_0(%arg0: i32, %arg1: i32) -> (i32, i32) {
    %c0_i32 = arith.constant 0 : i32
    %c0_i32_0 = arith.constant 0 : i32
    return %arg0, %c0_i32 : i32, i32
  }
  func.func @transform_1(%arg0: i32, %arg1: i32) -> (i32, i32) {
    %c0_i32 = arith.constant 0 : i32
    return %arg0, %arg1 : i32, i32
  }
  func.func @transform_2(%arg0: i32, %arg1: i32) -> (i32, i32) {
    %c0_i32 = arith.constant 0 : i32
    return %arg0, %arg1 : i32, i32
  }
}

</mosaic_0001>

<llo_original>
// kernel: tpu_custom_call.1
$region0: #{tpu_custom_call.1}
  #allocation0 [shape = 'u32[]', space=smem, size = 0x4, offset = 0x4, fixed_abs, tag = 'smem constant byte address 0x4 - core index']
  #allocation1 [shape = 'u32[144,128]{1,0:T(1,128)}', space=vmem, size = 0x12000, scoped, tag = 'internal scratch']
  %s0 = inlined_call_operand.vmem [shape: f32[8,1], index: 0, kind: input, shape index: {}]
  %s1 = inlined_call_operand.hbm [shape: f32[8,256], index: 1, kind: input, shape index: {}]
  %s2 = inlined_call_operand.hbm [shape: f32[8,256], index: 2, kind: output, shape index: {}]
  %s3 = sld [smem:[#allocation0]]
  $region22: #{tpu_custom_call.1} parent=0
    _
  %s5 = ssub.s32 1, %s3
  %s6 = scalar_select 0, %s5, %s3
  $region1: #{tpu_custom_call.1} parent=0
    #allocation2 [shape = 'u8[8192]{0}', space=vmem, size = 0x2000, scoped, tag = 'input window, operand 1, single buffered']
    #allocation3 [shape = 's32[1]{0}', space=sflag, size = 0x4, scoped, tag = 'scoped memory for tpu_custom_call.1']
    #allocation4 [shape = 's32[1]{0}', space=sflag, size = 0x4, scoped, tag = 'scoped memory for tpu_custom_call.1']
    #allocation5 [shape = 'u8[8192]{0}', space=vmem, size = 0x2000, scoped, tag = 'output window, operand 0, single buffered']
    %7 = vsyncpa [#allocation3], 0
    %8 = vsyncpa [#allocation4], 0
    // Predicated region
    $region2: #{tpu_custom_call.1} parent=1 // pred_check
      _
    $region3: #{tpu_custom_call.1} parent=1 // pred_check_branch
      %10 = sbr.rel (0) target = $region5
    $region4: #{tpu_custom_call.1} parent=1 // pred_region
      _
    $region5: #{tpu_custom_call.1} parent=1 // pred_fallthru
      _
    // Predicated region
    $region6: #{tpu_custom_call.1} parent=1 // pred_check
      _
    $region7: #{tpu_custom_call.1} parent=1 // pred_check_branch
      %12 = sbr.rel (0) target = $region9
    $region8: #{tpu_custom_call.1} parent=1 // pred_region
      %s14 = ssub.s32 256, 256
      %15 = vsyncadd [#allocation3], %s14
      %s17 = sshll.u32 [#allocation2], 4
      %s18 = int_to_ptr.vmem [resolvable:$true] %s17
      %20 = dma.hbm_to_vmem [thread:$0]  %s1, 256, %s18, [#allocation3]
    $region9: #{tpu_custom_call.1} parent=1 // pred_fallthru
      _
    // Predicated region
    $region10: #{tpu_custom_call.1} parent=1 // pred_check
      _
    $region11: #{tpu_custom_call.1} parent=1 // pred_check_branch
      %22 = sbr.rel (0) target = $region13
    $region12: #{tpu_custom_call.1} parent=1 // pred_region
      %23 = dma.done [#allocation3], 256
    $region13: #{tpu_custom_call.1} parent=1 // pred_fallthru
      _
    %v24 = vld [vmem:[#allocation2] sm:$0xff]
    %v25 = vld [vmem:[#allocation2 + $0x8] sm:$0xff]
    %v26 = vld [vmem:[%s0] sm:$0xff]
    %28 = vset.pattern.permute.xlu0 0
    %29 = vperm.xlu0 %28, %v26
    %v30 = vpop.permute.xlu0 %29
    %v32 = vmul.f32 %v24, %v30
    %v33 = vmul.f32 %v25, %v30
    %34 = vst [vmem:[#allocation5] sm:$0xff] %v32
    %35 = vst [vmem:[#allocation5 + $0x8] sm:$0xff] %v33
    // Predicated region
    $region14: #{tpu_custom_call.1} parent=1 // pred_check
      _
    $region15: #{tpu_custom_call.1} parent=1 // pred_check_branch
      %37 = sbr.rel (0) target = $region17
    $region16: #{tpu_custom_call.1} parent=1 // pred_region
      %s39 = ssub.s32 256, 256
      %40 = vsyncadd [#allocation4], %s39
      %s42 = sshll.u32 [#allocation5], 4
      %s43 = int_to_ptr.vmem [resolvable:$true] %s42
      %45 = dma.vmem_to_hbm [thread:$0]  %s43, 256, %s2, [#allocation4]
    $region17: #{tpu_custom_call.1} parent=1 // pred_fallthru
      _
    // Predicated region
    $region18: #{tpu_custom_call.1} parent=1 // pred_check
      _
    $region19: #{tpu_custom_call.1} parent=1 // pred_check_branch
      %47 = sbr.rel (0) target = $region21
    $region20: #{tpu_custom_call.1} parent=1 // pred_region
      %48 = dma.done [#allocation4], 256
    $region21: #{tpu_custom_call.1} parent=1 // pred_fallthru
      _
    %49 = vsyncpa [#allocation3], 1
    %50 = vsyncpa [#allocation4], 1

</llo_original>
